<compile_context>
chip_gen: v6e
topology: v6e:2x2x1
jax: 0.10.0
libtpu: 0.0.40
codegen_flags: <defaults>
</compile_context>

<pallas_src>
import functools

import jax
import jax.numpy as jnp
from jax.experimental import pallas as pl
from jax.experimental.pallas import tpu as pltpu

GAMMA = 1.0   # module default
EPS = 1e-7    # module default (unused in the PyTorch forward; used only as a
              # clamp for the fractional-gamma pow path here)


def _focal_loss_kernel(logits_ref, target_ref, out_ref, *, n_total, tile_n, gamma):
    i = pl.program_id(0)

    x = logits_ref[...].astype(jnp.float32)             # [TILE_N, C]
    t = target_ref[...]                                  # [TILE_N, 1] int32

    # Mask rows beyond the true batch size (padded last tile).
    row = jax.lax.broadcasted_iota(jnp.int32, (tile_n, 1), 0)
    valid = (i * tile_n + row) < n_total                  # [TILE_N, 1] bool

    # Numerically stable per-row cross entropy: logp = logsumexp(x) - x[target]
    m = jnp.max(x, axis=-1, keepdims=True)                             # [TILE_N, 1]
    lse = m + jnp.log(jnp.sum(jnp.exp(x - m), axis=-1, keepdims=True))
    cls = jax.lax.broadcasted_iota(jnp.int32, x.shape, 1)              # [TILE_N, C]
    # One-hot gather of the target logit. Out-of-range targets silently give
    # x_t = 0 (loss degenerates to logsumexp), same behavior as before.
    x_t = jnp.sum(jnp.where(cls == t, x, 0.0), axis=-1, keepdims=True)
    logp = lse - x_t                                                   # [TILE_N, 1]

    # Focal weighting.
    p = jnp.exp(-logp)
    one_minus_p = 1.0 - p
    if gamma == 1.0:
        w = one_minus_p                      # plain multiply, no pow
    elif float(gamma) == int(gamma):
        w = one_minus_p ** int(gamma)        # integer_pow -> multiplies
    else:
        w = jnp.maximum(one_minus_p, EPS) ** gamma   # clamp avoids NaN from p>1
    loss = jnp.where(valid, w * logp, 0.0)

    # One partial sum per tile, broadcast into a lane-dense (1, 8, 128) block.
    partial = jnp.sum(loss)
    out_ref[...] = jnp.full(out_ref.shape, partial, dtype=out_ref.dtype)


def focal_loss(logits, target, *, gamma=GAMMA, tile_n=None):
    """FocalLoss forward. logits: [N, C] (f32 or bf16), target: [N] ints -> scalar f32."""
    n, c = logits.shape
    itemsize = jnp.dtype(logits.dtype).itemsize

    if tile_n is None:
        # Size the row tile so one (double-buffered) logits buffer is ~4 MiB,
        # comfortably inside the scoped-VMEM defaults on v5e/v6e/v7x.
        tile_n = (4 * 1024 * 1024) // max(c * itemsize, 1)
        tile_n = max(8, min(2048, tile_n))
    tile_n = max(8, (int(tile_n) // 8) * 8)            # sublane multiple of 8
    tile_n = min(tile_n, ((n + 7) // 8) * 8)           # don't exceed (padded) N
    num_tiles = pl.cdiv(n, tile_n)

    target2d = target.astype(jnp.int32).reshape(n, 1)

    kernel = functools.partial(
        _focal_loss_kernel, n_total=n, tile_n=tile_n, gamma=gamma)

    partials = pl.pallas_call(
        kernel,
        out_shape=jax.ShapeDtypeStruct((num_tiles, 8, 128), jnp.float32),
        grid_spec=pltpu.PrefetchScalarGridSpec(
            num_scalar_prefetch=0,
            grid=(num_tiles,),
            in_specs=[
                pl.BlockSpec((tile_n, c), lambda i: (i, 0)),   # logits tile
                pl.BlockSpec((tile_n, 1), lambda i: (i, 0)),   # target tile
            ],
            out_specs=pl.BlockSpec((1, 8, 128), lambda i: (i, 0, 0)),
        ),
        compiler_params=pltpu.CompilerParams(
            dimension_semantics=("parallel",)),
    )(logits, target2d)

    # Final reduction (sum of per-tile partials / true N) in plain JAX.
    return jnp.sum(partials[:, 0, 0]) / jnp.float32(n)


if __name__ == "__main__":
    key = jax.random.PRNGKey(0)
    k1, k2 = jax.random.split(key)
    N, C = 64, 32
    logits = jax.random.normal(k1, (N, C), dtype=jnp.float32)
    target = jax.random.randint(k2, (N,), 0, C, dtype=jnp.int32)

    def ref_loss(lg, tg, gamma=GAMMA):
        lg = lg.astype(jnp.float32)
        logp = jax.nn.logsumexp(lg, axis=-1) - jnp.take_along_axis(
            lg, tg[:, None], axis=-1)[:, 0]
        p = jnp.exp(-logp)
        return jnp.mean((1.0 - p) ** gamma * logp)

    # 1) default tiling (single tile at this toy size)
    loss = focal_loss(logits, target)
    jax.block_until_ready(loss)
    assert jnp.allclose(loss, ref_loss(logits, target), rtol=1e-5, atol=1e-5), (
        loss, ref_loss(logits, target))

    # 2) forced multi-tile path with a partial (masked) last tile: 64 = 24+24+16
    loss_tiled = focal_loss(logits, target, tile_n=24)
    jax.block_until_ready(loss_tiled)
    assert jnp.allclose(loss_tiled, ref_loss(logits, target), rtol=1e-5, atol=1e-5), (
        loss_tiled, ref_loss(logits, target))

    # 3) bf16 logits accepted directly (halves HBM traffic at real shapes)
    logits_bf16 = logits.astype(jnp.bfloat16)
    loss_bf16 = focal_loss(logits_bf16, target)
    jax.block_until_ready(loss_bf16)
    assert jnp.allclose(loss_bf16, ref_loss(logits_bf16, target),
                        rtol=2e-2, atol=2e-2), (loss_bf16, ref_loss(logits_bf16, target))

    print("KERNEL_OK")
</pallas_src>

<mosaic_0001>
module attributes {stable_mosaic.version = 11 : i64} {
  func.func @_focal_loss_kernel(%arg0: i32, %arg1: memref<64x32xf32, #tpu.memory_space<vmem>>, %arg2: memref<64x1xi32, #tpu.memory_space<vmem>>, %arg3: memref<1x8x128xf32, #tpu.memory_space<vmem>>) attributes {dimension_semantics = [#tpu.dimension_semantics<parallel>], iteration_bounds = array<i64: 1>, scalar_prefetch = 0 : i64, scratch_operands = 0 : i64, tpu.core_type = #tpu.core_type<tc>, window_params = [{transform_indices = @transform_0, window_bounds = array<i64: 64, 32>}, {transform_indices = @transform_1, window_bounds = array<i64: 64, 1>}, {transform_indices = @transform_2, window_bounds = array<i64: 1, 8, 128>}]} {
    %c0 = arith.constant 0 : index
    %c0_0 = arith.constant 0 : index
    %0 = vector.load %arg1[%c0, %c0_0] : memref<64x32xf32, #tpu.memory_space<vmem>>, vector<64x32xf32>
    %c0_1 = arith.constant 0 : index
    %c0_2 = arith.constant 0 : index
    %1 = vector.load %arg2[%c0_1, %c0_2] : memref<64x1xi32, #tpu.memory_space<vmem>>, vector<64x1xi32>
    %2 = tpu.iota {dimensions = array<i32: 0>} : vector<64x1xi32>
    %c64_i32 = arith.constant 64 : i32
    %3 = arith.muli %arg0, %c64_i32 : i32
    %4 = vector.broadcast %3 : i32 to vector<64x1xi32>
    %5 = arith.addi %4, %2 : vector<64x1xi32>
    %c64_i32_3 = arith.constant 64 : i32
    %6 = vector.broadcast %c64_i32_3 : i32 to vector<64x1xi32>
    %7 = arith.cmpi slt, %5, %6 : vector<64x1xi32>
    %cst = arith.constant dense<0xFF800000> : vector<64xf32>
    %8 = vector.multi_reduction <maximumf>, %0, %cst [1] : vector<64x32xf32> to vector<64xf32>
    %9 = vector.shape_cast %8 : vector<64xf32> to vector<64x1xf32>
    %10 = vector.broadcast %9 : vector<64x1xf32> to vector<64x32xf32>
    %11 = arith.subf %0, %10 : vector<64x32xf32>
    %12 = math.exp %11 : vector<64x32xf32>
    %cst_4 = arith.constant dense<0.000000e+00> : vector<64xf32>
    %13 = vector.multi_reduction <add>, %12, %cst_4 [1] : vector<64x32xf32> to vector<64xf32>
    %14 = vector.shape_cast %13 : vector<64xf32> to vector<64x1xf32>
    %15 = math.log %14 : vector<64x1xf32>
    %16 = arith.addf %9, %15 : vector<64x1xf32>
    %17 = tpu.iota {dimensions = array<i32: 1>} : vector<64x32xi32>
    %18 = vector.broadcast %1 : vector<64x1xi32> to vector<64x32xi32>
    %19 = arith.cmpi eq, %17, %18 : vector<64x32xi32>
    %cst_5 = arith.constant 0.000000e+00 : f32
    %20 = vector.broadcast %cst_5 : f32 to vector<64x32xf32>
    %21 = arith.select %19, %0, %20 : vector<64x32xi1>, vector<64x32xf32>
    %cst_6 = arith.constant dense<0.000000e+00> : vector<64xf32>
    %22 = vector.multi_reduction <add>, %21, %cst_6 [1] : vector<64x32xf32> to vector<64xf32>
    %23 = vector.shape_cast %22 : vector<64xf32> to vector<64x1xf32>
    %24 = arith.subf %16, %23 : vector<64x1xf32>
    %cst_7 = arith.constant 0.000000e+00 : f32
    %25 = vector.broadcast %cst_7 : f32 to vector<64x1xf32>
    %26 = arith.subf %25, %24 : vector<64x1xf32>
    %27 = math.exp %26 : vector<64x1xf32>
    %cst_8 = arith.constant 1.000000e+00 : f32
    %28 = vector.broadcast %cst_8 : f32 to vector<64x1xf32>
    %29 = arith.subf %28, %27 : vector<64x1xf32>
    %30 = arith.mulf %29, %24 : vector<64x1xf32>
    %cst_9 = arith.constant 0.000000e+00 : f32
    %31 = vector.broadcast %cst_9 : f32 to vector<64x1xf32>
    %32 = arith.select %7, %30, %31 : vector<64x1xi1>, vector<64x1xf32>
    %33 = vector.shape_cast %32 : vector<64x1xf32> to vector<1x64x1xf32>
    %cst_10 = arith.constant dense<0.000000e+00> : vector<1xf32>
    %34 = vector.multi_reduction <add>, %33, %cst_10 [1, 2] : vector<1x64x1xf32> to vector<1xf32>
    %35 = vector.shape_cast %34 : vector<1xf32> to vector<1x1x1xf32>
    %36 = vector.extract %35[0, 0, 0] : f32 from vector<1x1x1xf32>
    %37 = vector.broadcast %36 : f32 to vector<1x8x128xf32>
    %c0_11 = arith.constant 0 : index
    %c0_12 = arith.constant 0 : index
    %c0_13 = arith.constant 0 : index
    %38 = vector.load %arg3[%c0_11, %c0_12, %c0_13] : memref<1x8x128xf32, #tpu.memory_space<vmem>>, vector<1x8x128xf32>
    tpu.vector_store %arg3[%c0_11, %c0_12, %c0_13], %37 {strides = array<i32>} : memref<1x8x128xf32, #tpu.memory_space<vmem>>, vector<1x8x128xf32>,
    return
  }
  func.func @transform_0(%arg0: i32) -> (i32, i32) {
    %c0_i32 = arith.constant 0 : i32
    %c0_i32_0 = arith.constant 0 : i32
    return %arg0, %c0_i32 : i32, i32
  }
  func.func @transform_1(%arg0: i32) -> (i32, i32) {
    %c0_i32 = arith.constant 0 : i32
    %c0_i32_0 = arith.constant 0 : i32
    return %arg0, %c0_i32 : i32, i32
  }
  func.func @transform_2(%arg0: i32) -> (i32, i32, i32) {
    %c0_i32 = arith.constant 0 : i32
    %c0_i32_0 = arith.constant 0 : i32
    %c0_i32_1 = arith.constant 0 : i32
    return %arg0, %c0_i32, %c0_i32_0 : i32, i32, i32
  }
}

</mosaic_0001>

<llo_original>
// kernel: tpu_custom_call.1
$region0: #{tpu_custom_call.1}
  #allocation0 [shape = 'u32[]', space=smem, size = 0x4, offset = 0x4, fixed_abs, tag = 'smem constant byte address 0x4 - core index']
  #allocation1 [shape = 'u32[144,128]{1,0:T(1,128)}', space=vmem, size = 0x12000, scoped, tag = 'internal scratch']
  %s0 = inlined_call_operand.vmem [shape: f32[64,32], index: 0, kind: input, shape index: {}]
  %s1 = inlined_call_operand.vmem [shape: s32[64,1], index: 1, kind: input, shape index: {}]
  %s2 = inlined_call_operand.hbm [shape: f32[1,8,128], index: 2, kind: output, shape index: {}]
  %s3 = sld [smem:[#allocation0]]
  $region18: #{tpu_custom_call.1} parent=0
    _
  %s5 = ssub.s32 1, %s3
  %s6 = scalar_select 0, %s5, %s3
  $region1: #{tpu_custom_call.1} parent=0
    #allocation2 [shape = 'u8[4096]{0}', space=vmem, size = 0x1000, scoped, tag = 'output window, operand 0, single buffered']
    #allocation3 [shape = 's32[1]{0}', space=sflag, size = 0x4, scoped, tag = 'scoped memory for tpu_custom_call.1']
    %7 = vsyncpa [#allocation3], 0
    // Predicated region
    $region2: #{tpu_custom_call.1} parent=1 // pred_check
      _
    $region3: #{tpu_custom_call.1} parent=1 // pred_check_branch
      %9 = sbr.rel (0) target = $region5
    $region4: #{tpu_custom_call.1} parent=1 // pred_region
      _
    $region5: #{tpu_custom_call.1} parent=1 // pred_fallthru
      _
    // Predicated region
    $region6: #{tpu_custom_call.1} parent=1 // pred_check
      _
    $region7: #{tpu_custom_call.1} parent=1 // pred_check_branch
      %11 = sbr.rel (0) target = $region9
    $region8: #{tpu_custom_call.1} parent=1 // pred_region
      _
    $region9: #{tpu_custom_call.1} parent=1 // pred_fallthru
      _
    %v12 = vld [vmem:[%s0] sm:$0xff]
    %v13 = vld [vmem:[%s0 + $0x8] sm:$0xff]
    %v14 = vld [vmem:[%s0 + $0x10] sm:$0xff]
    %v15 = vld [vmem:[%s0 + $0x18] sm:$0xff]
    %v16 = vld [vmem:[%s0 + $0x20] sm:$0xff]
    %v17 = vld [vmem:[%s0 + $0x28] sm:$0xff]
    %v18 = vld [vmem:[%s0 + $0x30] sm:$0xff]
    %v19 = vld [vmem:[%s0 + $0x38] sm:$0xff]
    %v20 = vld [vmem:[%s1] sm:$0xff]
    %v21 = vld [vmem:[%s1 + $0x8] sm:$0xff]
    %v22 = vld [vmem:[%s1 + $0x10] sm:$0xff]
    %v23 = vld [vmem:[%s1 + $0x18] sm:$0xff]
    %v24 = vld [vmem:[%s1 + $0x20] sm:$0xff]
    %v25 = vld [vmem:[%s1 + $0x28] sm:$0xff]
    %v26 = vld [vmem:[%s1 + $0x30] sm:$0xff]
    %v27 = vld [vmem:[%s1 + $0x38] sm:$0xff]
    %v28 = vlaneseq
    %v29 = vshrl.u32 %v28, 7
    %v30 = vadd.s32 %v29, 8
    %v31 = vadd.s32 %v29, 16
    %v32 = vadd.s32 %v29, 24
    %v33 = vadd.s32 %v29, 32
    %v34 = vadd.s32 %v29, 40
    %v35 = vadd.s32 %v29, 48
    %v36 = vadd.s32 %v29, 56
    %s37 = smul.u32 0, 64
    %v38 = vstv %s37
    %v39 = vadd.s32 %v38, %v29
    %v40 = vadd.s32 %v38, %v30
    %v41 = vadd.s32 %v38, %v31
    %v42 = vadd.s32 %v38, %v32
    %v43 = vadd.s32 %v38, %v33
    %v44 = vadd.s32 %v38, %v34
    %v45 = vadd.s32 %v38, %v35
    %v46 = vadd.s32 %v38, %v36
    %vm47 = vcmp.lt.s32.totalorder %v39, 64
    %vm48 = vcmp.lt.s32.totalorder %v40, 64
    %vm49 = vcmp.lt.s32.totalorder %v41, 64
    %vm50 = vcmp.lt.s32.totalorder %v42, 64
    %vm51 = vcmp.lt.s32.totalorder %v43, 64
    %vm52 = vcmp.lt.s32.totalorder %v44, 64
    %vm53 = vcmp.lt.s32.totalorder %v45, 64
    %vm54 = vcmp.lt.s32.totalorder %v46, 64
    %vm55 = vcmask 261120
    %v56 = vsel %vm55, %v12, -inf
    %57 = vmax.xlane.f32.xlu0 %v56
    %v58 = vpop.xlane.xlu0 %57
    %v59 = vsel %vm55, %v13, -inf
    %60 = vmax.xlane.f32.xlu0 %v59
    %v61 = vpop.xlane.xlu0 %60
    %v62 = vsel %vm55, %v14, -inf
    %63 = vmax.xlane.f32.xlu0 %v62
    %v64 = vpop.xlane.xlu0 %63
    %v65 = vsel %vm55, %v15, -inf
    %66 = vmax.xlane.f32.xlu0 %v65
    %v67 = vpop.xlane.xlu0 %66
    %v68 = vsel %vm55, %v16, -inf
    %69 = vmax.xlane.f32.xlu0 %v68
    %v70 = vpop.xlane.xlu0 %69
    %v71 = vsel %vm55, %v17, -inf
    %72 = vmax.xlane.f32.xlu0 %v71
    %v73 = vpop.xlane.xlu0 %72
    %v74 = vsel %vm55, %v18, -inf
    %75 = vmax.xlane.f32.xlu0 %v74
    %v76 = vpop.xlane.xlu0 %75
    %v77 = vsel %vm55, %v19, -inf
    %78 = vmax.xlane.f32.xlu0 %v77
    %v79 = vpop.xlane.xlu0 %78
    %v80 = vsub.f32 %v12, %v58
    %v81 = vsub.f32 %v13, %v61
    %v82 = vsub.f32 %v14, %v64
    %v83 = vsub.f32 %v15, %v67
    %v84 = vsub.f32 %v16, %v70
    %v85 = vsub.f32 %v17, %v73
    %v86 = vsub.f32 %v18, %v76
    %v87 = vsub.f32 %v19, %v79
    %v88 = vmul.f32 %v80, 1.442695
    %v89 = vpow.pop %v88
    %v90 = vmul.f32 %v81, 1.442695
    %v91 = vpow.pop %v90
    %v92 = vmul.f32 %v82, 1.442695
    %v93 = vpow.pop %v92
    %v94 = vmul.f32 %v83, 1.442695
    %v95 = vpow.pop %v94
    %v96 = vmul.f32 %v84, 1.442695
    %v97 = vpow.pop %v96
    %v98 = vmul.f32 %v85, 1.442695
    %v99 = vpow.pop %v98
    %v100 = vmul.f32 %v86, 1.442695
    %v101 = vpow.pop %v100
    %v102 = vmul.f32 %v87, 1.442695
    %v103 = vpow.pop %v102
    %v104 = vsel %vm55, %v89, 0.0
    %105 = vadd.xlane.f32.xlu0 %v104
    %v106 = vpop.xlane.xlu0 %105
    %v107 = vsel %vm55, %v91, 0.0
    %108 = vadd.xlane.f32.xlu0 %v107
    %v109 = vpop.xlane.xlu0 %108
    %v110 = vsel %vm55, %v93, 0.0
    %111 = vadd.xlane.f32.xlu0 %v110
    %v112 = vpop.xlane.xlu0 %111
    %v113 = vsel %vm55, %v95, 0.0
    %114 = vadd.xlane.f32.xlu0 %v113
    %v115 = vpop.xlane.xlu0 %114
    %v116 = vsel %vm55, %v97, 0.0
    %117 = vadd.xlane.f32.xlu0 %v116
    %v118 = vpop.xlane.xlu0 %117
    %v119 = vsel %vm55, %v99, 0.0
    %120 = vadd.xlane.f32.xlu0 %v119
    %v121 = vpop.xlane.xlu0 %120
    %v122 = vsel %vm55, %v101, 0.0
    %123 = vadd.xlane.f32.xlu0 %v122
    %v124 = vpop.xlane.xlu0 %123
    %v125 = vsel %vm55, %v103, 0.0
    %126 = vadd.xlane.f32.xlu0 %v125
    %v127 = vpop.xlane.xlu0 %126
    %v128 = vlog2.pop %v106
    %v129 = vmul.f32 %v128, 0.6931472
    %v130 = vlog2.pop %v109
    %v131 = vmul.f32 %v130, 0.6931472
    %v132 = vlog2.pop %v112
    %v133 = vmul.f32 %v132, 0.6931472
    %v134 = vlog2.pop %v115
    %v135 = vmul.f32 %v134, 0.6931472
    %v136 = vlog2.pop %v118
    %v137 = vmul.f32 %v136, 0.6931472
    %v138 = vlog2.pop %v121
    %v139 = vmul.f32 %v138, 0.6931472
    %v140 = vlog2.pop %v124
    %v141 = vmul.f32 %v140, 0.6931472
    %v142 = vlog2.pop %v127
    %v143 = vmul.f32 %v142, 0.6931472
    %v144 = vadd.f32 %v58, %v129
    %v145 = vadd.f32 %v61, %v131
    %v146 = vadd.f32 %v64, %v133
    %v147 = vadd.f32 %v67, %v135
    %v148 = vadd.f32 %v70, %v137
    %v149 = vadd.f32 %v73, %v139
    %v150 = vadd.f32 %v76, %v141
    %v151 = vadd.f32 %v79, %v143
    %v152 = vlaneseq
    %v153 = vand.u32 %v152, 127
    %154 = vset.pattern.permute.xlu0 0
    %155 = vperm.xlu0 %154, %v20
    %v156 = vpop.permute.xlu0 %155
    %157 = vset.pattern.permute.xlu0 0
    %158 = vperm.xlu0 %157, %v21
    %v159 = vpop.permute.xlu0 %158
    %160 = vset.pattern.permute.xlu0 0
    %161 = vperm.xlu0 %160, %v22
    %v162 = vpop.permute.xlu0 %161
    %163 = vset.pattern.permute.xlu0 0
    %164 = vperm.xlu0 %163, %v23
    %v165 = vpop.permute.xlu0 %164
    %166 = vset.pattern.permute.xlu0 0
    %167 = vperm.xlu0 %166, %v24
    %v168 = vpop.permute.xlu0 %167
    %169 = vset.pattern.permute.xlu0 0
    %170 = vperm.xlu0 %169, %v25
    %v171 = vpop.permute.xlu0 %170
    %172 = vset.pattern.permute.xlu0 0
    %173 = vperm.xlu0 %172, %v26
    %v174 = vpop.permute.xlu0 %173
    %175 = vset.pattern.permute.xlu0 0
    %176 = vperm.xlu0 %175, %v27
    %v177 = vpop.permute.xlu0 %176
    %vm178 = vcmp.eq.s32.totalorder %v153, %v156
    %vm179 = vcmp.eq.s32.totalorder %v153, %v159
    %vm180 = vcmp.eq.s32.totalorder %v153, %v162
    %vm181 = vcmp.eq.s32.totalorder %v153, %v165
    %vm182 = vcmp.eq.s32.totalorder %v153, %v168
    %vm183 = vcmp.eq.s32.totalorder %v153, %v171
    %vm184 = vcmp.eq.s32.totalorder %v153, %v174
    %vm185 = vcmp.eq.s32.totalorder %v153, %v177
    %v186 = vsel %vm178, %v12, 0.0
    %v187 = vsel %vm179, %v13, 0.0
    %v188 = vsel %vm180, %v14, 0.0
    %v189 = vsel %vm181, %v15, 0.0
    %v190 = vsel %vm182, %v16, 0.0
    %v191 = vsel %vm183, %v17, 0.0
    %v192 = vsel %vm184, %v18, 0.0
    %v193 = vsel %vm185, %v19, 0.0
    %v194 = vsel %vm55, %v186, 0.0
    %195 = vadd.xlane.f32.xlu0 %v194
    %v196 = vpop.xlane.xlu0 %195
    %v197 = vsel %vm55, %v187, 0.0
    %198 = vadd.xlane.f32.xlu0 %v197
    %v199 = vpop.xlane.xlu0 %198
    %v200 = vsel %vm55, %v188, 0.0
    %201 = vadd.xlane.f32.xlu0 %v200
    %v202 = vpop.xlane.xlu0 %201
    %v203 = vsel %vm55, %v189, 0.0
    %204 = vadd.xlane.f32.xlu0 %v203
    %v205 = vpop.xlane.xlu0 %204
    %v206 = vsel %vm55, %v190, 0.0
    %207 = vadd.xlane.f32.xlu0 %v206
    %v208 = vpop.xlane.xlu0 %207
    %v209 = vsel %vm55, %v191, 0.0
    %210 = vadd.xlane.f32.xlu0 %v209
    %v211 = vpop.xlane.xlu0 %210
    %v212 = vsel %vm55, %v192, 0.0
    %213 = vadd.xlane.f32.xlu0 %v212
    %v214 = vpop.xlane.xlu0 %213
    %v215 = vsel %vm55, %v193, 0.0
    %216 = vadd.xlane.f32.xlu0 %v215
    %v217 = vpop.xlane.xlu0 %216
    %v218 = vsub.f32 %v144, %v196
    %v219 = vsub.f32 %v145, %v199
    %v220 = vsub.f32 %v146, %v202
    %v221 = vsub.f32 %v147, %v205
    %v222 = vsub.f32 %v148, %v208
    %v223 = vsub.f32 %v149, %v211
    %v224 = vsub.f32 %v150, %v214
    %v225 = vsub.f32 %v151, %v217
    %v226 = vsub.f32 0.0, %v218
    %v227 = vsub.f32 0.0, %v219
    %v228 = vsub.f32 0.0, %v220
    %v229 = vsub.f32 0.0, %v221
    %v230 = vsub.f32 0.0, %v222
    %v231 = vsub.f32 0.0, %v223
    %v232 = vsub.f32 0.0, %v224
    %v233 = vsub.f32 0.0, %v225
    %v234 = vmul.f32 %v226, 1.442695
    %v235 = vpow.pop %v234
    %v236 = vmul.f32 %v227, 1.442695
    %v237 = vpow.pop %v236
    %v238 = vmul.f32 %v228, 1.442695
    %v239 = vpow.pop %v238
    %v240 = vmul.f32 %v229, 1.442695
    %v241 = vpow.pop %v240
    %v242 = vmul.f32 %v230, 1.442695
    %v243 = vpow.pop %v242
    %v244 = vmul.f32 %v231, 1.442695
    %v245 = vpow.pop %v244
    %v246 = vmul.f32 %v232, 1.442695
    %v247 = vpow.pop %v246
    %v248 = vmul.f32 %v233, 1.442695
    %v249 = vpow.pop %v248
    %v250 = vsub.f32 1.0, %v235
    %v251 = vsub.f32 1.0, %v237
    %v252 = vsub.f32 1.0, %v239
    %v253 = vsub.f32 1.0, %v241
    %v254 = vsub.f32 1.0, %v243
    %v255 = vsub.f32 1.0, %v245
    %v256 = vsub.f32 1.0, %v247
    %v257 = vsub.f32 1.0, %v249
    %v258 = vmul.f32 %v250, %v218
    %v259 = vmul.f32 %v251, %v219
    %v260 = vmul.f32 %v252, %v220
    %v261 = vmul.f32 %v253, %v221
    %v262 = vmul.f32 %v254, %v222
    %v263 = vmul.f32 %v255, %v223
    %v264 = vmul.f32 %v256, %v224
    %v265 = vmul.f32 %v257, %v225
    %v266 = vsel %vm47, %v258, 0.0
    %v267 = vsel %vm48, %v259, 0.0
    %v268 = vsel %vm49, %v260, 0.0
    %v269 = vsel %vm50, %v261, 0.0
    %v270 = vsel %vm51, %v262, 0.0
    %v271 = vsel %vm52, %v263, 0.0
    %v272 = vsel %vm53, %v264, 0.0
    %v273 = vsel %vm54, %v265, 0.0
    %vm274 = vcmask 7168
    %v275 = vsel %vm274, %v266, 0.0
    %v276 = vsel %vm274, %v267, 0.0
    %v277 = vadd.f32 %v275, %v276
    %v278 = vsel %vm274, %v268, 0.0
    %v279 = vadd.f32 %v277, %v278
    %v280 = vsel %vm274, %v269, 0.0
    %v281 = vadd.f32 %v279, %v280
    %v282 = vsel %vm274, %v270, 0.0
    %v283 = vadd.f32 %v281, %v282
    %v284 = vsel %vm274, %v271, 0.0
    %v285 = vadd.f32 %v283, %v284
    %v286 = vsel %vm274, %v272, 0.0
    %v287 = vadd.f32 %v285, %v286
    %v288 = vsel %vm274, %v273, 0.0
    %v289 = vadd.f32 %v287, %v288
    %290 = vadd.xlane.f32.xlu0 %v289
    %v291 = vpop.xlane.xlu0 %290
    %v292 = vrot.slane %v291, 4
    %v293 = vadd.f32 %v291, %v292
    %v294 = vrot.slane %v293, 2
    %v295 = vadd.f32 %v293, %v294
    %v296 = vrot.slane %v295, 1
    %v297 = vadd.f32 %v295, %v296
    %s298 = vtos %v297
    %v299 = vstv %s298
    %300 = vst [vmem:[#allocation2] sm:$0xff] %v299
    // Predicated region
    $region10: #{tpu_custom_call.1} parent=1 // pred_check
      _
    $region11: #{tpu_custom_call.1} parent=1 // pred_check_branch
      %302 = sbr.rel (0) target = $region13
    $region12: #{tpu_custom_call.1} parent=1 // pred_region
      %s304 = ssub.s32 128, 128
      %305 = vsyncadd [#allocation3], %s304
      %s307 = sshll.u32 [#allocation2], 4
      %s308 = int_to_ptr.vmem [resolvable:$true] %s307
      %310 = dma.vmem_to_hbm [thread:$0]  %s308, 128, %s2, [#allocation3]
    $region13: #{tpu_custom_call.1} parent=1 // pred_fallthru
      _
    // Predicated region
    $region14: #{tpu_custom_call.1} parent=1 // pred_check
      _
    $region15: #{tpu_custom_call.1} parent=1 // pred_check_branch
      %312 = sbr.rel (0) target = $region17
    $region16: #{tpu_custom_call.1} parent=1 // pred_region
      %313 = dma.done [#allocation3], 128
    $region17: #{tpu_custom_call.1} parent=1 // pred_fallthru
      _
    %314 = vsyncpa [#allocation3], 1

</llo_original>
